<compile_context>
chip_gen: v5e
topology: v5e:2x2
jax: 0.10.0
libtpu: 0.0.40
codegen_flags: <defaults>
</compile_context>

<pallas_src>
import functools

import jax
import jax.numpy as jnp
from jax.experimental import pallas as pl
from jax.experimental.pallas import tpu as pltpu


def _round_up(x, m):
    return ((x + m - 1) // m) * m


def _pick_block(padded_dim, unit, cap):
    """Largest multiple-of-`unit` divisor of `padded_dim` that is <= cap."""
    c = (min(padded_dim, cap) // unit) * unit
    while c > unit:
        if padded_dim % c == 0:
            return c
        c -= unit
    return unit


# ----------------------------- kernels --------------------------------------


def _pool_sum_kernel(x_ref, sum_ref):
    # x_ref  : (row_block, col_block)  native dtype
    # sum_ref: (row_block, 1)          f32, resident across the HW grid axis
    j = pl.program_id(1)

    @pl.when(j == 0)
    def _():
        sum_ref[...] = jnp.zeros_like(sum_ref)

    # Per-tile partial sum over the lane (spatial) axis, accumulated in f32
    # across the reduction grid axis.  x stays in its native dtype.
    sum_ref[...] += jnp.sum(x_ref[...].astype(jnp.float32), axis=-1,
                            keepdims=True)


def _gate_kernel(p_ref, w1t_ref, w2t_ref, g_ref, *, inv_hw):
    # p_ref: (Bp, Cp) f32 pooled *sums*; divide by the true H*W here.
    pooled = p_ref[...] * inv_hw
    h = jnp.dot(pooled, w1t_ref[...], preferred_element_type=jnp.float32)
    h = jnp.maximum(h, 0.0)
    s = jnp.dot(h, w2t_ref[...], preferred_element_type=jnp.float32)
    g_ref[...] = jax.nn.sigmoid(s)


def _scale_kernel(x_ref, g_ref, o_ref):
    # Broadcast the per-row gate over the lane axis; multiply in x's dtype.
    o_ref[...] = x_ref[...] * g_ref[...].astype(o_ref.dtype)


# ----------------------------- wrapper ---------------------------------------


def se_layer(x, w1, w2, *, row_block_cap=256, col_block_cap=2048):
    """SELayer forward.  x: (B, C, H, W); w1: (C//r, C); w2: (C, C//r)."""
    B, C, H, W = x.shape
    HW = H * W
    rows = B * C
    mid = w1.shape[0]

    # ---- lane-dense 2D layout, zero-padded to the block grid -----------------
    R = _round_up(rows, 8)
    L = _round_up(HW, 128)
    row_block = _pick_block(R, 8, row_block_cap)
    col_block = _pick_block(L, 128, col_block_cap)

    x2d = x.reshape(rows, HW)
    if (R, L) != (rows, HW):
        x2d = jnp.pad(x2d, ((0, R - rows), (0, L - HW)))

    grid = (R // row_block, L // col_block)

    # ---- pass 1: streaming global-sum pool (reduction axis last) -------------
    sums = pl.pallas_call(
        _pool_sum_kernel,
        out_shape=jax.ShapeDtypeStruct((R, 1), jnp.float32),
        grid_spec=pltpu.PrefetchScalarGridSpec(
            num_scalar_prefetch=0,
            grid=grid,
            in_specs=[pl.BlockSpec((row_block, col_block),
                                   lambda i, j: (i, j))],
            out_specs=pl.BlockSpec((row_block, 1), lambda i, j: (i, 0)),
        ),
        compiler_params=pltpu.CompilerParams(
            dimension_semantics=("parallel", "arbitrary")),
    )(x2d)

    # ---- pass 2: tiny FC -> ReLU -> FC -> sigmoid on pooled (B, C) -----------
    Bp = _round_up(B, 8)
    Cp = _round_up(C, 128)
    Mp = _round_up(mid, 128)

    pooled = sums[:rows, 0].reshape(B, C)
    pooled_p = jnp.zeros((Bp, Cp), jnp.float32).at[:B, :C].set(pooled)
    w1t_p = jnp.zeros((Cp, Mp), jnp.float32).at[:C, :mid].set(
        w1.T.astype(jnp.float32))
    w2t_p = jnp.zeros((Mp, Cp), jnp.float32).at[:mid, :C].set(
        w2.T.astype(jnp.float32))

    gate_p = pl.pallas_call(
        functools.partial(_gate_kernel, inv_hw=1.0 / float(HW)),
        out_shape=jax.ShapeDtypeStruct((Bp, Cp), jnp.float32),
        in_specs=[pl.BlockSpec(memory_space=pltpu.MemorySpace.VMEM)] * 3,
        out_specs=pl.BlockSpec(memory_space=pltpu.MemorySpace.VMEM),
    )(pooled_p, w1t_p, w2t_p)

    gate2d = gate_p[:B, :C].reshape(rows, 1)
    if R != rows:
        gate2d = jnp.pad(gate2d, ((0, R - rows), (0, 0)))

    # ---- pass 3: streaming channel-wise rescale (lane-dense, in place) -------
    out2d = pl.pallas_call(
        _scale_kernel,
        out_shape=jax.ShapeDtypeStruct((R, L), x.dtype),
        grid_spec=pltpu.PrefetchScalarGridSpec(
            num_scalar_prefetch=0,
            grid=grid,
            in_specs=[
                pl.BlockSpec((row_block, col_block), lambda i, j: (i, j)),
                pl.BlockSpec((row_block, 1), lambda i, j: (i, 0)),
            ],
            out_specs=pl.BlockSpec((row_block, col_block),
                                   lambda i, j: (i, j)),
        ),
        compiler_params=pltpu.CompilerParams(
            dimension_semantics=("parallel", "parallel")),
        input_output_aliases={0: 0},
    )(x2d, gate2d)

    return out2d[:rows, :HW].reshape(B, C, H, W)


# ----------------------------- demo / check ----------------------------------


if __name__ == "__main__":
    def _ref(x, w1, w2):
        pooled = jnp.mean(x.astype(jnp.float32), axis=(2, 3))
        h = jnp.maximum(pooled @ w1.T.astype(jnp.float32), 0.0)
        s = jax.nn.sigmoid(h @ w2.T.astype(jnp.float32))
        return (x.astype(jnp.float32) * s[:, :, None, None]).astype(x.dtype)

    se = jax.jit(se_layer)
    reduction = 16
    keys = jax.random.split(jax.random.PRNGKey(0), 6)

    # Case 1: lane-aligned spatial dims (HW = 256).
    B, C, H, W = 2, 32, 16, 16
    mid = C // reduction
    x = jax.random.normal(keys[0], (B, C, H, W), dtype=jnp.float32)
    w1 = jax.random.normal(keys[1], (mid, C), jnp.float32) / jnp.sqrt(C)
    w2 = jax.random.normal(keys[2], (C, mid), jnp.float32) / jnp.sqrt(mid)
    out = se(x, w1, w2)
    jax.block_until_ready(out)
    assert jnp.allclose(out, _ref(x, w1, w2), atol=1e-5, rtol=1e-5), \
        "mismatch vs reference (case 1)"

    # Case 2: ragged spatial dims (HW = 49) exercising the zero-padded lanes.
    B2, C2, H2, W2 = 3, 32, 7, 7
    mid2 = C2 // reduction
    x2 = jax.random.normal(keys[3], (B2, C2, H2, W2), dtype=jnp.float32)
    w1b = jax.random.normal(keys[4], (mid2, C2), jnp.float32) / jnp.sqrt(C2)
    w2b = jax.random.normal(keys[5], (C2, mid2), jnp.float32) / jnp.sqrt(mid2)
    out2 = se(x2, w1b, w2b)
    jax.block_until_ready(out2)
    assert jnp.allclose(out2, _ref(x2, w1b, w2b), atol=1e-5, rtol=1e-5), \
        "mismatch vs reference (case 2)"

    print("KERNEL_OK")
</pallas_src>

<mosaic_0001>
module attributes {stable_mosaic.version = 11 : i64} {
  func.func @_gate_kernel(%arg0: memref<8x128xf32, #tpu.memory_space<vmem>>, %arg1: memref<128x128xf32, #tpu.memory_space<vmem>>, %arg2: memref<128x128xf32, #tpu.memory_space<vmem>>, %arg3: memref<8x128xf32, #tpu.memory_space<vmem>>) attributes {dimension_semantics = [], scalar_prefetch = 0 : i64, scratch_operands = 0 : i64, tpu.core_type = #tpu.core_type<tc>} {
    %c0 = arith.constant 0 : index
    %c0_0 = arith.constant 0 : index
    %0 = vector.load %arg0[%c0, %c0_0] : memref<8x128xf32, #tpu.memory_space<vmem>>, vector<8x128xf32>
    %cst = arith.constant 3.906250e-03 : f32
    %1 = vector.broadcast %cst : f32 to vector<8x128xf32>
    %2 = arith.mulf %0, %1 : vector<8x128xf32>
    %c0_1 = arith.constant 0 : index
    %c0_2 = arith.constant 0 : index
    %3 = vector.load %arg1[%c0_1, %c0_2] : memref<128x128xf32, #tpu.memory_space<vmem>>, vector<128x128xf32>
    %cst_3 = arith.constant dense<0.000000e+00> : vector<8x128xf32>
    %4 = tpu.matmul %2, %3, %cst_3 {dimension_numbers = #tpu.dot_dimension_numbers<[1], [0], [0], [1], [0, 0, 1, 1], [], []>} : vector<8x128xf32>, vector<128x128xf32>, vector<8x128xf32> -> vector<8x128xf32>
    %cst_4 = arith.constant 0.000000e+00 : f32
    %5 = vector.broadcast %cst_4 : f32 to vector<8x128xf32>
    %6 = arith.maximumf %4, %5 : vector<8x128xf32>
    %c0_5 = arith.constant 0 : index
    %c0_6 = arith.constant 0 : index
    %7 = vector.load %arg2[%c0_5, %c0_6] : memref<128x128xf32, #tpu.memory_space<vmem>>, vector<128x128xf32>
    %cst_7 = arith.constant dense<0.000000e+00> : vector<8x128xf32>
    %8 = tpu.matmul %6, %7, %cst_7 {dimension_numbers = #tpu.dot_dimension_numbers<[1], [0], [0], [1], [0, 0, 1, 1], [], []>} : vector<8x128xf32>, vector<128x128xf32>, vector<8x128xf32> -> vector<8x128xf32>
    %9 = arith.negf %8 : vector<8x128xf32>
    %10 = math.exp %9 : vector<8x128xf32>
    %cst_8 = arith.constant 1.000000e+00 : f32
    %11 = vector.broadcast %cst_8 : f32 to vector<8x128xf32>
    %12 = arith.addf %11, %10 : vector<8x128xf32>
    %13 = arith.divf %11, %12 : vector<8x128xf32>
    %c0_9 = arith.constant 0 : index
    %c0_10 = arith.constant 0 : index
    %14 = vector.load %arg3[%c0_9, %c0_10] : memref<8x128xf32, #tpu.memory_space<vmem>>, vector<8x128xf32>
    tpu.vector_store %arg3[%c0_9, %c0_10], %13 {strides = array<i32>} : memref<8x128xf32, #tpu.memory_space<vmem>>, vector<8x128xf32>,
    return
  }
}

module attributes {stable_mosaic.version = 11 : i64} {
  func.func @_pool_sum_kernel(%arg0: i32, %arg1: i32, %arg2: memref<64x256xf32, #tpu.memory_space<vmem>>, %arg3: memref<64x1xf32, #tpu.memory_space<vmem>>) attributes {dimension_semantics = [#tpu.dimension_semantics<parallel>, #tpu.dimension_semantics<arbitrary>], iteration_bounds = array<i64: 1, 1>, scalar_prefetch = 0 : i64, scratch_operands = 0 : i64, tpu.core_type = #tpu.core_type<tc>, window_params = [{transform_indices = @transform_0, window_bounds = array<i64: 64, 256>}, {transform_indices = @transform_1, window_bounds = array<i64: 64, 1>}]} {
    %c0_i32 = arith.constant 0 : i32
    %0 = arith.cmpi eq, %arg1, %c0_i32 : i32
    %1 = arith.extui %0 : i1 to i32
    %c0_i32_0 = arith.constant 0 : i32
    %2 = arith.cmpi ne, %1, %c0_i32_0 : i32
    scf.if %2 {
      %cst_6 = arith.constant 0.000000e+00 : f32
      %9 = vector.broadcast %cst_6 : f32 to vector<64x1xf32>
      %c0_7 = arith.constant 0 : index
      %c0_8 = arith.constant 0 : index
      %10 = vector.load %arg3[%c0_7, %c0_8] : memref<64x1xf32, #tpu.memory_space<vmem>>, vector<64x1xf32>
      tpu.vector_store %arg3[%c0_7, %c0_8], %9 {strides = array<i32>} : memref<64x1xf32, #tpu.memory_space<vmem>>, vector<64x1xf32>,
    } else {
    }
    %c0 = arith.constant 0 : index
    %c0_1 = arith.constant 0 : index
    %3 = vector.load %arg3[%c0, %c0_1] : memref<64x1xf32, #tpu.memory_space<vmem>>, vector<64x1xf32>
    %c0_2 = arith.constant 0 : index
    %c0_3 = arith.constant 0 : index
    %4 = vector.load %arg2[%c0_2, %c0_3] : memref<64x256xf32, #tpu.memory_space<vmem>>, vector<64x256xf32>
    %cst = arith.constant dense<0.000000e+00> : vector<64xf32>
    %5 = vector.multi_reduction <add>, %4, %cst [1] : vector<64x256xf32> to vector<64xf32>
    %6 = vector.shape_cast %5 : vector<64xf32> to vector<64x1xf32>
    %7 = arith.addf %3, %6 : vector<64x1xf32>
    %c0_4 = arith.constant 0 : index
    %c0_5 = arith.constant 0 : index
    %8 = vector.load %arg3[%c0_4, %c0_5] : memref<64x1xf32, #tpu.memory_space<vmem>>, vector<64x1xf32>
    tpu.vector_store %arg3[%c0_4, %c0_5], %7 {strides = array<i32>} : memref<64x1xf32, #tpu.memory_space<vmem>>, vector<64x1xf32>,
    return
  }
  func.func @transform_0(%arg0: i32, %arg1: i32) -> (i32, i32) {
    %c0_i32 = arith.constant 0 : i32
    return %arg0, %arg1 : i32, i32
  }
  func.func @transform_1(%arg0: i32, %arg1: i32) -> (i32, i32) {
    %c0_i32 = arith.constant 0 : i32
    %c0_i32_0 = arith.constant 0 : i32
    return %arg0, %c0_i32 : i32, i32
  }
}

module attributes {stable_mosaic.version = 11 : i64} {
  func.func @_scale_kernel(%arg0: i32, %arg1: i32, %arg2: memref<64x256xf32, #tpu.memory_space<vmem>>, %arg3: memref<64x1xf32, #tpu.memory_space<vmem>>, %arg4: memref<64x256xf32, #tpu.memory_space<vmem>>) attributes {dimension_semantics = [#tpu.dimension_semantics<parallel>, #tpu.dimension_semantics<parallel>], iteration_bounds = array<i64: 1, 1>, scalar_prefetch = 0 : i64, scratch_operands = 0 : i64, tpu.core_type = #tpu.core_type<tc>, window_params = [{transform_indices = @transform_0, window_bounds = array<i64: 64, 256>}, {transform_indices = @transform_1, window_bounds = array<i64: 64, 1>}, {transform_indices = @transform_2, window_bounds = array<i64: 64, 256>}]} {
    %c0 = arith.constant 0 : index
    %c0_0 = arith.constant 0 : index
    %0 = vector.load %arg2[%c0, %c0_0] : memref<64x256xf32, #tpu.memory_space<vmem>>, vector<64x256xf32>
    %c0_1 = arith.constant 0 : index
    %c0_2 = arith.constant 0 : index
    %1 = vector.load %arg3[%c0_1, %c0_2] : memref<64x1xf32, #tpu.memory_space<vmem>>, vector<64x1xf32>
    %2 = vector.broadcast %1 : vector<64x1xf32> to vector<64x256xf32>
    %3 = arith.mulf %0, %2 : vector<64x256xf32>
    %c0_3 = arith.constant 0 : index
    %c0_4 = arith.constant 0 : index
    %4 = vector.load %arg4[%c0_3, %c0_4] : memref<64x256xf32, #tpu.memory_space<vmem>>, vector<64x256xf32>
    tpu.vector_store %arg4[%c0_3, %c0_4], %3 {strides = array<i32>} : memref<64x256xf32, #tpu.memory_space<vmem>>, vector<64x256xf32>,
    return
  }
  func.func @transform_0(%arg0: i32, %arg1: i32) -> (i32, i32) {
    %c0_i32 = arith.constant 0 : i32
    return %arg0, %arg1 : i32, i32
  }
  func.func @transform_1(%arg0: i32, %arg1: i32) -> (i32, i32) {
    %c0_i32 = arith.constant 0 : i32
    %c0_i32_0 = arith.constant 0 : i32
    return %arg0, %c0_i32 : i32, i32
  }
  func.func @transform_2(%arg0: i32, %arg1: i32) -> (i32, i32) {
    %c0_i32 = arith.constant 0 : i32
    return %arg0, %arg1 : i32, i32
  }
}

</mosaic_0001>

<llo_original>
// kernel: se_layer.4
$region0: #{se_layer.4}
  #allocation0 [shape = 'u32[]', space=smem, size = 0x4, offset = 0x4, fixed_abs, tag = 'smem constant byte address 0x4 - core index']
  #allocation1 [shape = 'u32[72,128]{1,0:T(1,128)}', space=vmem, size = 0x9000, scoped, tag = 'internal scratch']
  %s0 = inlined_call_operand.vmem [shape: f32[8,128], index: 0, kind: input, shape index: {}]
  %s1 = inlined_call_operand.vmem [shape: f32[128,128], index: 1, kind: input, shape index: {}]
  %s2 = inlined_call_operand.vmem [shape: f32[128,128], index: 2, kind: input, shape index: {}]
  %s3 = inlined_call_operand.vmem [shape: f32[8,128], index: 3, kind: output, shape index: {}]
  %s4 = sld [smem:[#allocation0]]
  $region22: #{se_layer.4} parent=0
    _
  %s6 = ssub.s32 1, %s4
  %s7 = scalar_select 0, %s6, %s4
  // Predicated region
  $region2: #{se_layer.4} parent=0 // pred_check
    _
  $region3: #{se_layer.4} parent=0 // pred_check_branch
    %9 = sbr.rel (0) target = $region5
  $region4: #{se_layer.4} parent=0 // pred_region
    _
  $region5: #{se_layer.4} parent=0 // pred_fallthru
    _
  // Predicated region
  $region6: #{se_layer.4} parent=0 // pred_check
    _
  $region7: #{se_layer.4} parent=0 // pred_check_branch
    %11 = sbr.rel (0) target = $region9
  $region8: #{se_layer.4} parent=0 // pred_region
    _
  $region9: #{se_layer.4} parent=0 // pred_fallthru
    _
  // Predicated region
  $region10: #{se_layer.4} parent=0 // pred_check
    _
  $region11: #{se_layer.4} parent=0 // pred_check_branch
    %13 = sbr.rel (0) target = $region13
  $region12: #{se_layer.4} parent=0 // pred_region
    _
  $region13: #{se_layer.4} parent=0 // pred_fallthru
    _
  %v14 = vld [vmem:[%s0] sm:$0xff]
  %v15 = vmul.f32 %v14, 0.00390625
  %v16 = vld [vmem:[%s1] sm:$0xff]
  %v17 = vld [vmem:[%s1 + $0x8] sm:$0xff]
  %v18 = vld [vmem:[%s1 + $0x10] sm:$0xff]
  %v19 = vld [vmem:[%s1 + $0x18] sm:$0xff]
  %v20 = vld [vmem:[%s1 + $0x20] sm:$0xff]
  %v21 = vld [vmem:[%s1 + $0x28] sm:$0xff]
  %v22 = vld [vmem:[%s1 + $0x30] sm:$0xff]
  %v23 = vld [vmem:[%s1 + $0x38] sm:$0xff]
  %v24 = vld [vmem:[%s1 + $0x40] sm:$0xff]
  %v25 = vld [vmem:[%s1 + $0x48] sm:$0xff]
  %v26 = vld [vmem:[%s1 + $0x50] sm:$0xff]
  %v27 = vld [vmem:[%s1 + $0x58] sm:$0xff]
  %v28 = vld [vmem:[%s1 + $0x60] sm:$0xff]
  %v29 = vld [vmem:[%s1 + $0x68] sm:$0xff]
  %v30 = vld [vmem:[%s1 + $0x70] sm:$0xff]
  %v31 = vld [vmem:[%s1 + $0x78] sm:$0xff]
  %32 = vmatpush.msra.mxu0 %v31
  %33 = vmatpush.msra.mxu0 %v30
  %34 = vmatpush.msra.mxu0 %v29
  %35 = vmatpush.msra.mxu0 %v28
  %36 = vmatpush.msra.mxu0 %v27
  %37 = vmatpush.msra.mxu0 %v26
  %38 = vmatpush.msra.mxu0 %v25
  %39 = vmatpush.msra.mxu0 %v24
  %40 = vmatpush.msra.mxu0 %v23
  %41 = vmatpush.msra.mxu0 %v22
  %42 = vmatpush.msra.mxu0 %v21
  %43 = vmatpush.msra.mxu0 %v20
  %44 = vmatpush.msra.mxu0 %v19
  %45 = vmatpush.msra.mxu0 %v18
  %46 = vmatpush.msra.mxu0 %v17
  %47 = vmatpush.msra.mxu0 %v16
  %48 = vmatmul.f32.gmra.mxu0 %v15
  %v49 = vpop.f32.mrf.mxu0
  %v50 = vadd.f32 0.0, %v49
  %51 = vdwg.mxu0
  %v52 = vmax.f32 %v50, 0.0
  %v53 = vld [vmem:[%s2] sm:$0xff]
  %v54 = vld [vmem:[%s2 + $0x8] sm:$0xff]
  %v55 = vld [vmem:[%s2 + $0x10] sm:$0xff]
  %v56 = vld [vmem:[%s2 + $0x18] sm:$0xff]
  %v57 = vld [vmem:[%s2 + $0x20] sm:$0xff]
  %v58 = vld [vmem:[%s2 + $0x28] sm:$0xff]
  %v59 = vld [vmem:[%s2 + $0x30] sm:$0xff]
  %v60 = vld [vmem:[%s2 + $0x38] sm:$0xff]
  %v61 = vld [vmem:[%s2 + $0x40] sm:$0xff]
  %v62 = vld [vmem:[%s2 + $0x48] sm:$0xff]
  %v63 = vld [vmem:[%s2 + $0x50] sm:$0xff]
  %v64 = vld [vmem:[%s2 + $0x58] sm:$0xff]
  %v65 = vld [vmem:[%s2 + $0x60] sm:$0xff]
  %v66 = vld [vmem:[%s2 + $0x68] sm:$0xff]
  %v67 = vld [vmem:[%s2 + $0x70] sm:$0xff]
  %v68 = vld [vmem:[%s2 + $0x78] sm:$0xff]
  %69 = vmatpush.msra.mxu0 %v68
  %70 = vmatpush.msra.mxu0 %v67
  %71 = vmatpush.msra.mxu0 %v66
  %72 = vmatpush.msra.mxu0 %v65
  %73 = vmatpush.msra.mxu0 %v64
  %74 = vmatpush.msra.mxu0 %v63
  %75 = vmatpush.msra.mxu0 %v62
  %76 = vmatpush.msra.mxu0 %v61
  %77 = vmatpush.msra.mxu0 %v60
  %78 = vmatpush.msra.mxu0 %v59
  %79 = vmatpush.msra.mxu0 %v58
  %80 = vmatpush.msra.mxu0 %v57
  %81 = vmatpush.msra.mxu0 %v56
  %82 = vmatpush.msra.mxu0 %v55
  %83 = vmatpush.msra.mxu0 %v54
  %84 = vmatpush.msra.mxu0 %v53
  %85 = vmatmul.f32.gmra.mxu0 %v52
  %v86 = vpop.f32.mrf.mxu0
  %v87 = vadd.f32 0.0, %v86
  %88 = vdwg.mxu0
  %v89 = vxor.u32 %v87, 2147483648
  %v90 = vmul.f32 %v89, 1.442695
  %v91 = vpow.pop %v90
  %v92 = vadd.f32 %v91, 1.0
  %v93 = vrcp.pop %v92
  %v94 = vmul.f32 %v92, %v93
  %v95 = vsub.f32 1.0, %v94
  %v96 = vmul.f32 %v93, %v95
  %v97 = vadd.f32 %v93, %v96
  %vm98 = vweird.f32 %v92
  %vm99 = vweird.f32 %v93
  %vm100 = vmor %vm98, %vm99
  %v101 = vsel %vm100, %v93, %v97
  %v102 = vand.u32 2147483647, %v92
  %vm103 = vcmp.eq.f32.partialorder %v102, 8.507059e+37
  %v104 = vand.u32 %v92, 2147483648
  %v105 = vor.u32 1.1754944e-38, %v104
  %v106 = vsel %vm103, %v105, %v101
  %v107 = vmul.f32 1.0, %v106
  %108 = vst [vmem:[%s3] sm:$0xff] %v107
  // Predicated region
  $region14: #{se_layer.4} parent=0 // pred_check
    _
  $region15: #{se_layer.4} parent=0 // pred_check_branch
    %110 = sbr.rel (0) target = $region17
  $region16: #{se_layer.4} parent=0 // pred_region
    _
  $region17: #{se_layer.4} parent=0 // pred_fallthru
    _
  // Predicated region
  $region18: #{se_layer.4} parent=0 // pred_check
    _
  $region19: #{se_layer.4} parent=0 // pred_check_branch
    %112 = sbr.rel (0) target = $region21
  $region20: #{se_layer.4} parent=0 // pred_region
    _
  $region21: #{se_layer.4} parent=0 // pred_fallthru
    _

// kernel: se_layer.3
$region0: #{se_layer.3}
  #allocation0 [shape = 'u32[]', space=smem, size = 0x4, offset = 0x4, fixed_abs, tag = 'smem constant byte address 0x4 - core index']
  #allocation1 [shape = 'u32[72,128]{1,0:T(1,128)}', space=vmem, size = 0x9000, scoped, tag = 'internal scratch']
  %s0 = inlined_call_operand.vmem [shape: f32[64,256], index: 0, kind: input, shape index: {}]
  %s1 = inlined_call_operand.vmem [shape: f32[64,1], index: 1, kind: output, shape index: {}]
  %s2 = sld [smem:[#allocation0]]
  $region18: #{se_layer.3} parent=0
    _
  %s4 = ssub.s32 1, %s2
  %s5 = scalar_select 0, %s4, %s2
  // Predicated region
  $region2: #{se_layer.3} parent=0 // pred_check
    _
  $region3: #{se_layer.3} parent=0 // pred_check_branch
    %7 = sbr.rel (0) target = $region5
  $region4: #{se_layer.3} parent=0 // pred_region
    _
  $region5: #{se_layer.3} parent=0 // pred_fallthru
    _
  %p8 = scmp.eq.s32.totalorder 0, 0
  // Predicated region
  $region6: #{se_layer.3} parent=0 // pred_check
    %p9 = pneg %p8
  $region7: #{se_layer.3} parent=0 // pred_check_branch
    %11 = sbr.rel (%p9) target = $region9
  $region8: #{se_layer.3} parent=0 // pred_region
    %vm12 = vcmask 7168
    %13 = vst.msk [vmem:[%s1] sm:$0xff] %vm12, 0.0
    %14 = vst.msk [vmem:[%s1 + $0x8] sm:$0xff] %vm12, 0.0
    %15 = vst.msk [vmem:[%s1 + $0x10] sm:$0xff] %vm12, 0.0
    %16 = vst.msk [vmem:[%s1 + $0x18] sm:$0xff] %vm12, 0.0
    %17 = vst.msk [vmem:[%s1 + $0x20] sm:$0xff] %vm12, 0.0
    %18 = vst.msk [vmem:[%s1 + $0x28] sm:$0xff] %vm12, 0.0
    %19 = vst.msk [vmem:[%s1 + $0x30] sm:$0xff] %vm12, 0.0
    %20 = vst.msk [vmem:[%s1 + $0x38] sm:$0xff] %vm12, 0.0
  $region9: #{se_layer.3} parent=0 // pred_fallthru
    _
  %v21 = vld [vmem:[%s1] sm:$0xff]
  %v22 = vld [vmem:[%s1 + $0x8] sm:$0xff]
  %v23 = vld [vmem:[%s1 + $0x10] sm:$0xff]
  %v24 = vld [vmem:[%s1 + $0x18] sm:$0xff]
  %v25 = vld [vmem:[%s1 + $0x20] sm:$0xff]
  %v26 = vld [vmem:[%s1 + $0x28] sm:$0xff]
  %v27 = vld [vmem:[%s1 + $0x30] sm:$0xff]
  %v28 = vld [vmem:[%s1 + $0x38] sm:$0xff]
  %v29 = vld [vmem:[%s0] sm:$0xff]
  %v30 = vld [vmem:[%s0 + $0x8] sm:$0xff]
  %v31 = vld [vmem:[%s0 + $0x10] sm:$0xff]
  %v32 = vld [vmem:[%s0 + $0x18] sm:$0xff]
  %v33 = vld [vmem:[%s0 + $0x20] sm:$0xff]
  %v34 = vld [vmem:[%s0 + $0x28] sm:$0xff]
  %v35 = vld [vmem:[%s0 + $0x30] sm:$0xff]
  %v36 = vld [vmem:[%s0 + $0x38] sm:$0xff]
  %v37 = vld [vmem:[%s0 + $0x40] sm:$0xff]
  %v38 = vld [vmem:[%s0 + $0x48] sm:$0xff]
  %v39 = vld [vmem:[%s0 + $0x50] sm:$0xff]
  %v40 = vld [vmem:[%s0 + $0x58] sm:$0xff]
  %v41 = vld [vmem:[%s0 + $0x60] sm:$0xff]
  %v42 = vld [vmem:[%s0 + $0x68] sm:$0xff]
  %v43 = vld [vmem:[%s0 + $0x70] sm:$0xff]
  %v44 = vld [vmem:[%s0 + $0x78] sm:$0xff]
  %v45 = vadd.f32 %v29, %v30
  %46 = vadd.xlane.f32.xlu0 %v45
  %v47 = vpop.xlane.xlu0 %46
  %v48 = vadd.f32 %v31, %v32
  %49 = vadd.xlane.f32.xlu0 %v48
  %v50 = vpop.xlane.xlu0 %49
  %v51 = vadd.f32 %v33, %v34
  %52 = vadd.xlane.f32.xlu0 %v51
  %v53 = vpop.xlane.xlu0 %52
  %v54 = vadd.f32 %v35, %v36
  %55 = vadd.xlane.f32.xlu0 %v54
  %v56 = vpop.xlane.xlu0 %55
  %v57 = vadd.f32 %v37, %v38
  %58 = vadd.xlane.f32.xlu0 %v57
  %v59 = vpop.xlane.xlu0 %58
  %v60 = vadd.f32 %v39, %v40
  %61 = vadd.xlane.f32.xlu0 %v60
  %v62 = vpop.xlane.xlu0 %61
  %v63 = vadd.f32 %v41, %v42
  %64 = vadd.xlane.f32.xlu0 %v63
  %v65 = vpop.xlane.xlu0 %64
  %v66 = vadd.f32 %v43, %v44
  %67 = vadd.xlane.f32.xlu0 %v66
  %v68 = vpop.xlane.xlu0 %67
  %v69 = vadd.f32 %v21, %v47
  %v70 = vadd.f32 %v22, %v50
  %v71 = vadd.f32 %v23, %v53
  %v72 = vadd.f32 %v24, %v56
  %v73 = vadd.f32 %v25, %v59
  %v74 = vadd.f32 %v26, %v62
  %v75 = vadd.f32 %v27, %v65
  %v76 = vadd.f32 %v28, %v68
  %vm77 = vcmask 7168
  %78 = vst.msk [vmem:[%s1] sm:$0xff] %vm77, %v69
  %79 = vst.msk [vmem:[%s1 + $0x8] sm:$0xff] %vm77, %v70
  %80 = vst.msk [vmem:[%s1 + $0x10] sm:$0xff] %vm77, %v71
  %81 = vst.msk [vmem:[%s1 + $0x18] sm:$0xff] %vm77, %v72
  %82 = vst.msk [vmem:[%s1 + $0x20] sm:$0xff] %vm77, %v73
  %83 = vst.msk [vmem:[%s1 + $0x28] sm:$0xff] %vm77, %v74
  %84 = vst.msk [vmem:[%s1 + $0x30] sm:$0xff] %vm77, %v75
  %85 = vst.msk [vmem:[%s1 + $0x38] sm:$0xff] %vm77, %v76
  // Predicated region
  $region10: #{se_layer.3} parent=0 // pred_check
    _
  $region11: #{se_layer.3} parent=0 // pred_check_branch
    %87 = sbr.rel (0) target = $region13
  $region12: #{se_layer.3} parent=0 // pred_region
    _
  $region13: #{se_layer.3} parent=0 // pred_fallthru
    _
  // Predicated region
  $region14: #{se_layer.3} parent=0 // pred_check
    _
  $region15: #{se_layer.3} parent=0 // pred_check_branch
    %89 = sbr.rel (0) target = $region17
  $region16: #{se_layer.3} parent=0 // pred_region
    _
  $region17: #{se_layer.3} parent=0 // pred_fallthru
    _

// kernel: se_layer.5
$region0: #{se_layer.5}
  #allocation0 [shape = 'u32[]', space=smem, size = 0x4, offset = 0x4, fixed_abs, tag = 'smem constant byte address 0x4 - core index']
  #allocation1 [shape = 'u32[72,128]{1,0:T(1,128)}', space=vmem, size = 0x9000, scoped, tag = 'internal scratch']
  %s0 = inlined_call_operand.vmem [shape: f32[64,256], index: 0, kind: input, shape index: {}, may-alias: {0,2}]
  %s1 = inlined_call_operand.vmem [shape: f32[64,1], index: 1, kind: input, shape index: {}]
  %s2 = inlined_call_operand.vmem [shape: f32[64,256], index: 2, kind: output, shape index: {}, may-alias: {0,2}]
  %s3 = sld [smem:[#allocation0]]
  $region18: #{se_layer.5} parent=0
    _
  %s5 = ssub.s32 1, %s3
  %s6 = scalar_select 0, %s5, %s3
  // Predicated region
  $region2: #{se_layer.5} parent=0 // pred_check
    _
  $region3: #{se_layer.5} parent=0 // pred_check_branch
    %8 = sbr.rel (0) target = $region5
  $region4: #{se_layer.5} parent=0 // pred_region
    _
  $region5: #{se_layer.5} parent=0 // pred_fallthru
    _
  // Predicated region
  $region6: #{se_layer.5} parent=0 // pred_check
    _
  $region7: #{se_layer.5} parent=0 // pred_check_branch
    %10 = sbr.rel (0) target = $region9
  $region8: #{se_layer.5} parent=0 // pred_region
    _
  $region9: #{se_layer.5} parent=0 // pred_fallthru
    _
  %v11 = vld [vmem:[%s0] sm:$0xff]
  %v12 = vld [vmem:[%s0 + $0x8] sm:$0xff]
  %v13 = vld [vmem:[%s0 + $0x10] sm:$0xff]
  %v14 = vld [vmem:[%s0 + $0x18] sm:$0xff]
  %v15 = vld [vmem:[%s0 + $0x20] sm:$0xff]
  %v16 = vld [vmem:[%s0 + $0x28] sm:$0xff]
  %v17 = vld [vmem:[%s0 + $0x30] sm:$0xff]
  %v18 = vld [vmem:[%s0 + $0x38] sm:$0xff]
  %v19 = vld [vmem:[%s0 + $0x40] sm:$0xff]
  %v20 = vld [vmem:[%s0 + $0x48] sm:$0xff]
  %v21 = vld [vmem:[%s0 + $0x50] sm:$0xff]
  %v22 = vld [vmem:[%s0 + $0x58] sm:$0xff]
  %v23 = vld [vmem:[%s0 + $0x60] sm:$0xff]
  %v24 = vld [vmem:[%s0 + $0x68] sm:$0xff]
  %v25 = vld [vmem:[%s0 + $0x70] sm:$0xff]
  %v26 = vld [vmem:[%s0 + $0x78] sm:$0xff]
  %v27 = vld [vmem:[%s1] sm:$0xff]
  %v28 = vld [vmem:[%s1 + $0x8] sm:$0xff]
  %v29 = vld [vmem:[%s1 + $0x10] sm:$0xff]
  %v30 = vld [vmem:[%s1 + $0x18] sm:$0xff]
  %v31 = vld [vmem:[%s1 + $0x20] sm:$0xff]
  %v32 = vld [vmem:[%s1 + $0x28] sm:$0xff]
  %v33 = vld [vmem:[%s1 + $0x30] sm:$0xff]
  %v34 = vld [vmem:[%s1 + $0x38] sm:$0xff]
  %36 = vset.pattern.permute.xlu0 0
  %37 = vperm.xlu0 %36, %v27
  %v38 = vpop.permute.xlu0 %37
  %41 = vset.pattern.permute.xlu0 0
  %42 = vperm.xlu0 %41, %v28
  %v43 = vpop.permute.xlu0 %42
  %46 = vset.pattern.permute.xlu0 0
  %47 = vperm.xlu0 %46, %v29
  %v48 = vpop.permute.xlu0 %47
  %51 = vset.pattern.permute.xlu0 0
  %52 = vperm.xlu0 %51, %v30
  %v53 = vpop.permute.xlu0 %52
  %56 = vset.pattern.permute.xlu0 0
  %57 = vperm.xlu0 %56, %v31
  %v58 = vpop.permute.xlu0 %57
  %61 = vset.pattern.permute.xlu0 0
  %62 = vperm.xlu0 %61, %v32
  %v63 = vpop.permute.xlu0 %62
  %66 = vset.pattern.permute.xlu0 0
  %67 = vperm.xlu0 %66, %v33
  %v68 = vpop.permute.xlu0 %67
  %71 = vset.pattern.permute.xlu0 0
  %72 = vperm.xlu0 %71, %v34
  %v73 = vpop.permute.xlu0 %72
  %v75 = vmul.f32 %v11, %v38
  %v76 = vmul.f32 %v12, %v38
  %v77 = vmul.f32 %v13, %v43
  %v78 = vmul.f32 %v14, %v43
  %v79 = vmul.f32 %v15, %v48
  %v80 = vmul.f32 %v16, %v48
  %v81 = vmul.f32 %v17, %v53
  %v82 = vmul.f32 %v18, %v53
  %v83 = vmul.f32 %v19, %v58
  %v84 = vmul.f32 %v20, %v58
  %v85 = vmul.f32 %v21, %v63
  %v86 = vmul.f32 %v22, %v63
  %v87 = vmul.f32 %v23, %v68
  %v88 = vmul.f32 %v24, %v68
  %v89 = vmul.f32 %v25, %v73
  %v90 = vmul.f32 %v26, %v73
  %91 = vst [vmem:[%s2] sm:$0xff] %v75
  %92 = vst [vmem:[%s2 + $0x8] sm:$0xff] %v76
  %93 = vst [vmem:[%s2 + $0x10] sm:$0xff] %v77
  %94 = vst [vmem:[%s2 + $0x18] sm:$0xff] %v78
  %95 = vst [vmem:[%s2 + $0x20] sm:$0xff] %v79
  %96 = vst [vmem:[%s2 + $0x28] sm:$0xff] %v80
  %97 = vst [vmem:[%s2 + $0x30] sm:$0xff] %v81
  %98 = vst [vmem:[%s2 + $0x38] sm:$0xff] %v82
  %99 = vst [vmem:[%s2 + $0x40] sm:$0xff] %v83
  %100 = vst [vmem:[%s2 + $0x48] sm:$0xff] %v84
  %101 = vst [vmem:[%s2 + $0x50] sm:$0xff] %v85
  %102 = vst [vmem:[%s2 + $0x58] sm:$0xff] %v86
  %103 = vst [vmem:[%s2 + $0x60] sm:$0xff] %v87
  %104 = vst [vmem:[%s2 + $0x68] sm:$0xff] %v88
  %105 = vst [vmem:[%s2 + $0x70] sm:$0xff] %v89
  %106 = vst [vmem:[%s2 + $0x78] sm:$0xff] %v90
  // Predicated region
  $region10: #{se_layer.5} parent=0 // pred_check
    _
  $region11: #{se_layer.5} parent=0 // pred_check_branch
    %108 = sbr.rel (0) target = $region13
  $region12: #{se_layer.5} parent=0 // pred_region
    _
  $region13: #{se_layer.5} parent=0 // pred_fallthru
    _
  // Predicated region
  $region14: #{se_layer.5} parent=0 // pred_check
    _
  $region15: #{se_layer.5} parent=0 // pred_check_branch
    %110 = sbr.rel (0) target = $region17
  $region16: #{se_layer.5} parent=0 // pred_region
    _
  $region17: #{se_layer.5} parent=0 // pred_fallthru
    _

</llo_original>
